<compile_context>
chip_gen: v5e
topology: v5e:2x2
jax: 0.10.0
libtpu: 0.0.40
codegen_flags: <defaults>
</compile_context>

<pallas_src>
import functools

import jax
import jax.numpy as jnp
from jax.experimental import pallas as pl
from jax.experimental.pallas import tpu as pltpu


def _round_up(x, m):
    return ((x + m - 1) // m) * m


# --------------------------------------------------------------------------
# Kernels
# --------------------------------------------------------------------------
def _linear_kernel_k1(x_ref, wT_ref, b_ref, o_ref):
    # Fast path: whole K fits in one tile -> no accumulator scratch round-trip.
    # x_ref: [tm, K], wT_ref: [K, tn], b_ref: [1, tn], o_ref: [tm, tn]
    acc = jnp.dot(x_ref[...], wT_ref[...], preferred_element_type=jnp.float32)
    o_ref[...] = (acc + b_ref[...].astype(jnp.float32)).astype(o_ref.dtype)


def _linear_kernel_acc(x_ref, wT_ref, b_ref, o_ref, acc_ref):
    # General path: K-innermost reduction with an f32 VMEM accumulator.
    k = pl.program_id(2)

    @pl.when(k == 0)
    def _():
        acc_ref[...] = jnp.zeros_like(acc_ref)

    acc_ref[...] += jnp.dot(
        x_ref[...], wT_ref[...], preferred_element_type=jnp.float32
    )

    @pl.when(k == pl.num_programs(2) - 1)
    def _():
        o_ref[...] = (acc_ref[...] + b_ref[...].astype(jnp.float32)).astype(o_ref.dtype)


# --------------------------------------------------------------------------
# Jitted forward (params already prepared / cached by the wrapper class)
# --------------------------------------------------------------------------
@functools.partial(
    jax.jit, static_argnames=("tm", "tn", "tk", "num_classes", "compute_dtype")
)
def _linear_forward(features, wT, b2d, *, tm, tn, tk, num_classes, compute_dtype):
    B, D = features.shape
    K, N = wT.shape
    out_dtype = features.dtype

    M = _round_up(B, tm)

    x = features
    if compute_dtype is not None and x.dtype != compute_dtype:
        x = x.astype(compute_dtype)
    x = jnp.pad(x, ((0, M - B), (0, K - D)))  # [M, K]

    grid = (M // tm, N // tn, K // tk)
    k_steps = grid[2]

    if k_steps == 1:
        kernel = _linear_kernel_k1
        scratch_shapes = []
    else:
        kernel = _linear_kernel_acc
        scratch_shapes = [pltpu.VMEM((tm, tn), jnp.float32)]

    cost = pl.CostEstimate(
        flops=2 * M * N * K,
        transcendentals=0,
        bytes_accessed=(
            x.size * x.dtype.itemsize
            + wT.size * wT.dtype.itemsize
            + b2d.size * 4
            + M * N * jnp.dtype(out_dtype).itemsize
        ),
    )

    out = pl.pallas_call(
        kernel,
        out_shape=jax.ShapeDtypeStruct((M, N), out_dtype),
        grid_spec=pltpu.PrefetchScalarGridSpec(
            num_scalar_prefetch=0,
            grid=grid,
            in_specs=[
                pl.BlockSpec((tm, tk), lambda i, j, k: (i, k)),   # x
                pl.BlockSpec((tk, tn), lambda i, j, k: (k, j)),   # W^T
                pl.BlockSpec((1, tn), lambda i, j, k: (0, j)),    # bias (per class tile)
            ],
            out_specs=pl.BlockSpec((tm, tn), lambda i, j, k: (i, j)),
            scratch_shapes=scratch_shapes,
        ),
        compiler_params=pltpu.CompilerParams(
            dimension_semantics=("parallel", "parallel", "arbitrary"),
            vmem_limit_bytes=48 * 1024 * 1024,  # sized for v7x (64 MiB physical)
        ),
        cost_estimate=cost,
    )(x, wT, b2d)

    return out[:B, :num_classes]


# --------------------------------------------------------------------------
# Wrapper: one-time parameter prep (transpose / pad / cast cached here)
# --------------------------------------------------------------------------
class LinearClassifierPallas:
    """Pallas port of LinearClassifier.forward (features @ W^T + b).

    The weight-norm variant ('wn') is a static reparameterization g*v/||v||
    folded into W once (see make_params); the forward pass is identical.
    """

    def __init__(self, weight, bias, *, compute_dtype=jnp.bfloat16):
        C, D = weight.shape
        assert bias.shape == (C,)
        self.num_classes = C
        self.feature_dim = D
        self.compute_dtype = compute_dtype

        # ---- static tile choices (depend only on C, D) -------------------
        # Lane-dense class tile (multiple of 128; 256-aligned when big enough
        # to keep the v6e/v7x 2x256^2 MXU fully fed).
        tn = min(512, _round_up(C, 128))
        if tn >= 256:
            tn = min(512, _round_up(tn, 256))
        # Large K tile cuts grid-step count; bf16 operands allow bigger tk
        # within the same (v7x-sized) VMEM budget.
        tk_cap = 2048 if compute_dtype == jnp.bfloat16 else 1024
        tk = min(tk_cap, _round_up(D, 128))

        N = _round_up(C, tn)
        K = _round_up(D, tk)

        # v7x: 2 TensorCores share the 'parallel' axes — if the class axis
        # would give a single parallel block, split it so both TCs get work.
        if N // tn == 1 and tn >= 256:
            tn //= 2  # N stays a multiple of tn

        self.tn, self.tk = tn, tk
        self.N, self.K = N, K

        # ---- one-time parameter prep (NOT redone per forward call) -------
        wT = jnp.transpose(weight)                      # [D, C]
        wT = jnp.pad(wT, ((0, K - D), (0, N - C)))      # [K, N]
        if compute_dtype is not None:
            wT = wT.astype(compute_dtype)
        self.wT = wT
        # Bias stays f32: only added in the f32 epilogue.
        self.b2d = jnp.pad(
            bias.astype(jnp.float32).reshape(1, C), ((0, 0), (0, N - C))
        )                                               # [1, N]
        # TODO(synk): fp8 weight path (v7x) would need per-channel scales.

    def __call__(self, features):
        B, D = features.shape
        assert D == self.feature_dim
        # bf16 packs [16,128] per vreg -> batch tile should be a multiple of 16.
        sub = 16 if self.compute_dtype == jnp.bfloat16 else 8
        tm = min(512, _round_up(B, sub))
        return _linear_forward(
            features, self.wT, self.b2d,
            tm=tm, tn=self.tn, tk=self.tk,
            num_classes=self.num_classes,
            compute_dtype=self.compute_dtype,
        )


# --------------------------------------------------------------------------
# Test helpers
# --------------------------------------------------------------------------
def make_params(key, num_classes, feature_dim, cls_type="linear"):
    """Deterministic synthetic parameters mirroring nn.Linear's shapes."""
    kw, kb, kg = jax.random.split(key, 3)
    bound = 1.0 / (feature_dim ** 0.5)
    v = jax.random.uniform(kw, (num_classes, feature_dim), jnp.float32, -bound, bound)
    b = jax.random.uniform(kb, (num_classes,), jnp.float32, -bound, bound)
    if cls_type == "linear":
        return v, b
    # weight_norm(name='weight'), default dim=0: w = g * v / ||v||_row
    g = jax.random.uniform(kg, (num_classes, 1), jnp.float32, 0.5, 1.5)
    norm = jnp.sqrt(jnp.sum(v * v, axis=1, keepdims=True))
    return g * v / norm, b


def reference_forward(features, weight, bias):
    return features @ weight.T + bias[None, :]


if __name__ == "__main__":
    key = jax.random.PRNGKey(0)
    k_x, k_p1, k_p2 = jax.random.split(key, 3)

    batch, feature_dim, num_classes = 8, 256, 10
    features = jax.random.normal(k_x, (batch, feature_dim), jnp.float32)

    ok = True

    # ---- type='linear', f32 compute path (tight numerical check) ----
    w, b = make_params(k_p1, num_classes, feature_dim, cls_type="linear")
    ref = reference_forward(features, w, b)

    clf_f32 = LinearClassifierPallas(w, b, compute_dtype=None)
    out = jax.block_until_ready(clf_f32(features))
    ok &= out.shape == (batch, num_classes)
    ok &= bool(jnp.allclose(out, ref, atol=1e-4, rtol=1e-4))

    # ---- type='linear', default bf16 MXU path (looser check) ----
    clf_bf16 = LinearClassifierPallas(w, b)  # compute_dtype=bf16 default
    out_bf = jax.block_until_ready(clf_bf16(features))
    ok &= out_bf.shape == (batch, num_classes)
    ok &= bool(jnp.allclose(out_bf, ref, atol=5e-2, rtol=5e-2))

    # ---- type='wn' (weight-norm folded once at construction) ----
    w2, b2 = make_params(k_p2, num_classes, feature_dim, cls_type="wn")
    clf_wn = LinearClassifierPallas(w2, b2, compute_dtype=None)
    out2 = jax.block_until_ready(clf_wn(features))
    ref2 = reference_forward(features, w2, b2)
    ok &= bool(jnp.allclose(out2, ref2, atol=1e-4, rtol=1e-4))

    assert ok
    print("KERNEL_OK")
</pallas_src>

<mosaic_0001>
module attributes {stable_mosaic.version = 11 : i64} {
  func.func @_linear_kernel_k1(%arg0: i32, %arg1: i32, %arg2: i32, %arg3: memref<8x256xf32, #tpu.memory_space<vmem>>, %arg4: memref<256x128xf32, #tpu.memory_space<vmem>>, %arg5: memref<1x128xf32, #tpu.memory_space<vmem>>, %arg6: memref<8x128xf32, #tpu.memory_space<vmem>>) attributes {dimension_semantics = [#tpu.dimension_semantics<parallel>, #tpu.dimension_semantics<parallel>, #tpu.dimension_semantics<arbitrary>], iteration_bounds = array<i64: 1, 1, 1>, scalar_prefetch = 0 : i64, scratch_operands = 0 : i64, tpu.core_type = #tpu.core_type<tc>, window_params = [{transform_indices = @transform_0, window_bounds = array<i64: 8, 256>}, {transform_indices = @transform_1, window_bounds = array<i64: 256, 128>}, {transform_indices = @transform_2, window_bounds = array<i64: 1, 128>}, {transform_indices = @transform_3, window_bounds = array<i64: 8, 128>}]} {
    %c0 = arith.constant 0 : index
    %c0_0 = arith.constant 0 : index
    %0 = vector.load %arg3[%c0, %c0_0] : memref<8x256xf32, #tpu.memory_space<vmem>>, vector<8x256xf32>
    %c0_1 = arith.constant 0 : index
    %c0_2 = arith.constant 0 : index
    %1 = vector.load %arg4[%c0_1, %c0_2] : memref<256x128xf32, #tpu.memory_space<vmem>>, vector<256x128xf32>
    %cst = arith.constant dense<0.000000e+00> : vector<8x128xf32>
    %2 = tpu.matmul %0, %1, %cst {dimension_numbers = #tpu.dot_dimension_numbers<[1], [0], [0], [1], [0, 0, 1, 1], [], []>} : vector<8x256xf32>, vector<256x128xf32>, vector<8x128xf32> -> vector<8x128xf32>
    %c0_3 = arith.constant 0 : index
    %c0_4 = arith.constant 0 : index
    %3 = vector.load %arg5[%c0_3, %c0_4] : memref<1x128xf32, #tpu.memory_space<vmem>>, vector<1x128xf32>
    %4 = vector.broadcast %3 : vector<1x128xf32> to vector<8x128xf32>
    %5 = arith.addf %2, %4 : vector<8x128xf32>
    %c0_5 = arith.constant 0 : index
    %c0_6 = arith.constant 0 : index
    %6 = vector.load %arg6[%c0_5, %c0_6] : memref<8x128xf32, #tpu.memory_space<vmem>>, vector<8x128xf32>
    tpu.vector_store %arg6[%c0_5, %c0_6], %5 {strides = array<i32>} : memref<8x128xf32, #tpu.memory_space<vmem>>, vector<8x128xf32>,
    return
  }
  func.func @transform_0(%arg0: i32, %arg1: i32, %arg2: i32) -> (i32, i32) {
    %c0_i32 = arith.constant 0 : i32
    return %arg0, %arg2 : i32, i32
  }
  func.func @transform_1(%arg0: i32, %arg1: i32, %arg2: i32) -> (i32, i32) {
    %c0_i32 = arith.constant 0 : i32
    return %arg2, %arg1 : i32, i32
  }
  func.func @transform_2(%arg0: i32, %arg1: i32, %arg2: i32) -> (i32, i32) {
    %c0_i32 = arith.constant 0 : i32
    %c0_i32_0 = arith.constant 0 : i32
    return %c0_i32, %arg1 : i32, i32
  }
  func.func @transform_3(%arg0: i32, %arg1: i32, %arg2: i32) -> (i32, i32) {
    %c0_i32 = arith.constant 0 : i32
    return %arg0, %arg1 : i32, i32
  }
}

</mosaic_0001>

<llo_original>
// kernel: _linear_forward.1
$region0: #{_linear_forward.1}
  #allocation0 [shape = 'u32[]', space=smem, size = 0x4, offset = 0x4, fixed_abs, tag = 'smem constant byte address 0x4 - core index']
  #allocation1 [shape = 'u32[72,128]{1,0:T(1,128)}', space=vmem, size = 0x9000, scoped, tag = 'internal scratch']
  %s0 = inlined_call_operand.hbm [shape: f32[8,256], index: 0, kind: input, shape index: {}]
  %s1 = inlined_call_operand.hbm [shape: f32[256,128], index: 1, kind: input, shape index: {}]
  %s2 = inlined_call_operand.vmem [shape: f32[1,128], index: 2, kind: input, shape index: {}]
  %s3 = inlined_call_operand.hbm [shape: f32[8,128], index: 3, kind: output, shape index: {}]
  %s4 = sld [smem:[#allocation0]]
  $region30: #{_linear_forward.1} parent=0
    _
  %s6 = ssub.s32 1, %s4
  %s7 = scalar_select 0, %s6, %s4
  $region1: #{_linear_forward.1} parent=0
    #allocation2 [shape = 'u8[8192]{0}', space=vmem, size = 0x2000, scoped, tag = 'input window, operand 0, single buffered']
    #allocation3 [shape = 's32[1]{0}', space=sflag, size = 0x4, scoped, tag = 'scoped memory for _linear_forward.1']
    #allocation4 [shape = 's32[1]{0}', space=sflag, size = 0x4, scoped, tag = 'scoped memory for _linear_forward.1']
    #allocation5 [shape = 'u8[131072]{0}', space=vmem, size = 0x20000, scoped, tag = 'input window, operand 1, single buffered']
    #allocation6 [shape = 's32[1]{0}', space=sflag, size = 0x4, scoped, tag = 'scoped memory for _linear_forward.1']
    #allocation7 [shape = 'u8[4096]{0}', space=vmem, size = 0x1000, scoped, tag = 'output window, operand 0, single buffered']
    %8 = vsyncpa [#allocation3], 0
    %9 = vsyncpa [#allocation6], 0
    %10 = vsyncpa [#allocation4], 0
    // Predicated region
    $region2: #{_linear_forward.1} parent=1 // pred_check
      _
    $region3: #{_linear_forward.1} parent=1 // pred_check_branch
      %12 = sbr.rel (0) target = $region5
    $region4: #{_linear_forward.1} parent=1 // pred_region
      %14 = vsyncadd [#allocation3], 0
      %s16 = sshll.u32 %s0, 4
      %s17 = int_to_ptr.hbm [resolvable:$true] %s16
      %s18 = sshll.u32 [#allocation2], 4
      %s19 = int_to_ptr.vmem [resolvable:$true] %s18
      %21 = dma.hbm_to_vmem [thread:$0]  %s17, 256, %s19, [#allocation3]
    $region5: #{_linear_forward.1} parent=1 // pred_fallthru
      _
    // Predicated region
    $region6: #{_linear_forward.1} parent=1 // pred_check
      _
    $region7: #{_linear_forward.1} parent=1 // pred_check_branch
      %23 = sbr.rel (0) target = $region9
    $region8: #{_linear_forward.1} parent=1 // pred_region
      %25 = vsyncadd [#allocation6], 0
      %s26 = sshll.u32 %s1, 4
      %s27 = int_to_ptr.hbm [resolvable:$true] %s26
      %s28 = sshll.u32 [#allocation5], 4
      %s29 = int_to_ptr.vmem [resolvable:$true] %s28
      %34 = dma.hbm_to_vmem [thread:$0]  %s27, 4096, %s29, [#allocation6], 128, 128, 8
    $region9: #{_linear_forward.1} parent=1 // pred_fallthru
      _
    // Predicated region
    $region10: #{_linear_forward.1} parent=1 // pred_check
      _
    $region11: #{_linear_forward.1} parent=1 // pred_check_branch
      %36 = sbr.rel (0) target = $region13
    $region12: #{_linear_forward.1} parent=1 // pred_region
      _
    $region13: #{_linear_forward.1} parent=1 // pred_fallthru
      _
    // Predicated region
    $region14: #{_linear_forward.1} parent=1 // pred_check
      _
    $region15: #{_linear_forward.1} parent=1 // pred_check_branch
      %38 = sbr.rel (0) target = $region17
    $region16: #{_linear_forward.1} parent=1 // pred_region
      %40 = dma.done [#allocation3], 256
    $region17: #{_linear_forward.1} parent=1 // pred_fallthru
      _
    // Predicated region
    $region18: #{_linear_forward.1} parent=1 // pred_check
      _
    $region19: #{_linear_forward.1} parent=1 // pred_check_branch
      %42 = sbr.rel (0) target = $region21
    $region20: #{_linear_forward.1} parent=1 // pred_region
      %44 = dma.done [#allocation6], 4096
    $region21: #{_linear_forward.1} parent=1 // pred_fallthru
      _
    %v45 = vld [vmem:[#allocation2] sm:$0xff]
    %v46 = vld [vmem:[#allocation2 + $0x8] sm:$0xff]
    %v47 = vld [vmem:[#allocation5] sm:$0xff]
    %v48 = vld [vmem:[#allocation5 + $0x8] sm:$0xff]
    %v49 = vld [vmem:[#allocation5 + $0x10] sm:$0xff]
    %v50 = vld [vmem:[#allocation5 + $0x18] sm:$0xff]
    %v51 = vld [vmem:[#allocation5 + $0x20] sm:$0xff]
    %v52 = vld [vmem:[#allocation5 + $0x28] sm:$0xff]
    %v53 = vld [vmem:[#allocation5 + $0x30] sm:$0xff]
    %v54 = vld [vmem:[#allocation5 + $0x38] sm:$0xff]
    %v55 = vld [vmem:[#allocation5 + $0x40] sm:$0xff]
    %v56 = vld [vmem:[#allocation5 + $0x48] sm:$0xff]
    %v57 = vld [vmem:[#allocation5 + $0x50] sm:$0xff]
    %v58 = vld [vmem:[#allocation5 + $0x58] sm:$0xff]
    %v59 = vld [vmem:[#allocation5 + $0x60] sm:$0xff]
    %v60 = vld [vmem:[#allocation5 + $0x68] sm:$0xff]
    %v61 = vld [vmem:[#allocation5 + $0x70] sm:$0xff]
    %v62 = vld [vmem:[#allocation5 + $0x78] sm:$0xff]
    %v63 = vld [vmem:[#allocation5 + $0x80] sm:$0xff]
    %v64 = vld [vmem:[#allocation5 + $0x88] sm:$0xff]
    %v65 = vld [vmem:[#allocation5 + $0x90] sm:$0xff]
    %v66 = vld [vmem:[#allocation5 + $0x98] sm:$0xff]
    %v67 = vld [vmem:[#allocation5 + $0xa0] sm:$0xff]
    %v68 = vld [vmem:[#allocation5 + $0xa8] sm:$0xff]
    %v69 = vld [vmem:[#allocation5 + $0xb0] sm:$0xff]
    %v70 = vld [vmem:[#allocation5 + $0xb8] sm:$0xff]
    %v71 = vld [vmem:[#allocation5 + $0xc0] sm:$0xff]
    %v72 = vld [vmem:[#allocation5 + $0xc8] sm:$0xff]
    %v73 = vld [vmem:[#allocation5 + $0xd0] sm:$0xff]
    %v74 = vld [vmem:[#allocation5 + $0xd8] sm:$0xff]
    %v75 = vld [vmem:[#allocation5 + $0xe0] sm:$0xff]
    %v76 = vld [vmem:[#allocation5 + $0xe8] sm:$0xff]
    %v77 = vld [vmem:[#allocation5 + $0xf0] sm:$0xff]
    %v78 = vld [vmem:[#allocation5 + $0xf8] sm:$0xff]
    %v79 = vld [vmem:[%s2] sm:$0x1]
    %v81 = vperm.slane %v79, 0
    %83 = vmatpush.msra.mxu0 %v62
    %84 = vmatpush.msra.mxu0 %v61
    %85 = vmatpush.msra.mxu0 %v60
    %86 = vmatpush.msra.mxu0 %v59
    %87 = vmatpush.msra.mxu0 %v58
    %88 = vmatpush.msra.mxu0 %v57
    %89 = vmatpush.msra.mxu0 %v56
    %90 = vmatpush.msra.mxu0 %v55
    %91 = vmatpush.msra.mxu0 %v54
    %92 = vmatpush.msra.mxu0 %v53
    %93 = vmatpush.msra.mxu0 %v52
    %94 = vmatpush.msra.mxu0 %v51
    %95 = vmatpush.msra.mxu0 %v50
    %96 = vmatpush.msra.mxu0 %v49
    %97 = vmatpush.msra.mxu0 %v48
    %98 = vmatpush.msra.mxu0 %v47
    %99 = vmatmul.f32.gmra.mxu0 %v45
    %v100 = vpop.f32.mrf.mxu0
    %v101 = vadd.f32 %v81, %v100
    %102 = vdwg.mxu0
    %103 = vmatpush.msra.mxu0 %v78
    %104 = vmatpush.msra.mxu0 %v77
    %105 = vmatpush.msra.mxu0 %v76
    %106 = vmatpush.msra.mxu0 %v75
    %107 = vmatpush.msra.mxu0 %v74
    %108 = vmatpush.msra.mxu0 %v73
    %109 = vmatpush.msra.mxu0 %v72
    %110 = vmatpush.msra.mxu0 %v71
    %111 = vmatpush.msra.mxu0 %v70
    %112 = vmatpush.msra.mxu0 %v69
    %113 = vmatpush.msra.mxu0 %v68
    %114 = vmatpush.msra.mxu0 %v67
    %115 = vmatpush.msra.mxu0 %v66
    %116 = vmatpush.msra.mxu0 %v65
    %117 = vmatpush.msra.mxu0 %v64
    %118 = vmatpush.msra.mxu0 %v63
    %119 = vmatmul.f32.gmra.mxu0 %v46
    %v120 = vpop.f32.mrf.mxu0
    %v121 = vadd.f32 %v101, %v120
    %122 = vdwg.mxu0
    %123 = vst [vmem:[#allocation7] sm:$0xff] %v121
    // Predicated region
    $region22: #{_linear_forward.1} parent=1 // pred_check
      _
    $region23: #{_linear_forward.1} parent=1 // pred_check_branch
      %125 = sbr.rel (0) target = $region25
    $region24: #{_linear_forward.1} parent=1 // pred_region
      %127 = vsyncadd [#allocation4], 0
      %s129 = sshll.u32 [#allocation7], 4
      %s130 = int_to_ptr.vmem [resolvable:$true] %s129
      %s131 = sshll.u32 %s3, 4
      %s132 = int_to_ptr.hbm [resolvable:$true] %s131
      %134 = dma.vmem_to_hbm [thread:$0]  %s130, 128, %s132, [#allocation4]
    $region25: #{_linear_forward.1} parent=1 // pred_fallthru
      _
    // Predicated region
    $region26: #{_linear_forward.1} parent=1 // pred_check
      _
    $region27: #{_linear_forward.1} parent=1 // pred_check_branch
      %136 = sbr.rel (0) target = $region29
    $region28: #{_linear_forward.1} parent=1 // pred_region
      %138 = dma.done [#allocation4], 128
    $region29: #{_linear_forward.1} parent=1 // pred_fallthru
      _
    %139 = vsyncpa [#allocation3], 1
    %140 = vsyncpa [#allocation6], 1
    %141 = vsyncpa [#allocation4], 1

</llo_original>
